<compile_context>
chip_gen: v6e
topology: v6e:2x2x1
jax: 0.10.0
libtpu: 0.0.40
codegen_flags: <defaults>
</compile_context>

<pallas_src>
import functools

import jax
import jax.numpy as jnp
from jax import lax
from jax.experimental import pallas as pl
from jax.experimental.pallas import tpu as pltpu

LEAKY_SLOPE = 0.01   # nn.LeakyReLU default
BN_EPS = 1e-5        # nn.BatchNorm2d default


def _round_up(x, m):
    return (x + m - 1) // m * m


def convres_kernel(p_ref, w_ref, g_ref, b_ref, o_ref, sum_ref, ssq_ref, *,
                   m_true, activation):
    """Fused conv (im2col matmul) + BatchNorm (batch stats) + activation.

    grid = (2, T):
      phase 0: conv tile + accumulate per-channel sum / sum-of-squares.
      phase 1: recompute conv tile, normalize with folded scale/shift,
               activation, lane-dense store.

    p_ref  : (tm, K)  bf16   im2col patches tile
    w_ref  : (K, Cp)  bf16   weight, Cout lane-padded to Cp (multiple of 128)
    g_ref  : (1, Cp)  f32    BN gamma (padded with 1)
    b_ref  : (1, Cp)  f32    BN beta  (padded with 0)
    o_ref  : (tm, Cp) f32    output tile
    sum_ref, ssq_ref : (1, Cp) f32 VMEM scratch (persist across the grid)
    """
    phase = pl.program_id(0)
    t = pl.program_id(1)

    # One MXU matmul per tile: bf16 operands, f32 accumulation.
    acc = jnp.dot(p_ref[...], w_ref[...], preferred_element_type=jnp.float32)

    @pl.when((phase == 0) & (t == 0))
    def _init():
        sum_ref[...] = jnp.zeros_like(sum_ref)
        ssq_ref[...] = jnp.zeros_like(ssq_ref)

    @pl.when(phase == 0)
    def _accumulate():
        # One-pass statistics: E[x] and E[x^2] in a single read of acc.
        sum_ref[...] += jnp.sum(acc, axis=0, keepdims=True)
        ssq_ref[...] += jnp.sum(acc * acc, axis=0, keepdims=True)

    @pl.when(phase == 1)
    def _finalize():
        inv_m = jnp.float32(1.0 / m_true)          # divide by REAL row count
        mean = sum_ref[...] * inv_m
        var = jnp.maximum(ssq_ref[...] * inv_m - mean * mean, 0.0)
        scale = g_ref[...] * lax.rsqrt(var + BN_EPS)   # gamma / sqrt(var+eps)
        shift = b_ref[...] - mean * scale              # beta - mean*scale
        y = acc * scale + shift                        # single FMA epilogue
        if activation == "leaky_relu":
            y = jnp.where(y >= 0.0, y, LEAKY_SLOPE * y)
        else:  # 'tanh'
            y = jnp.tanh(y)
        o_ref[...] = y


@functools.partial(jax.jit, static_argnames=("stride", "padding", "activation"))
def conv_res_forward(x_nchw, w_pt, bias, gamma, beta, *, stride, padding,
                     activation="leaky_relu"):
    """Forward of ConvRes (res_enable=False): Conv2d + BatchNorm2d
    (training-mode batch statistics) + LeakyReLU/Tanh.

    x_nchw : (N, Cin, H, W)
    w_pt   : (Cout, Cin, kH, kW)   -- PyTorch Conv2d weight layout
    bias, gamma, beta : (Cout,)
    Returns (N, Cout, Ho, Wo).
    """
    Cout, Cin, kH, kW = w_pt.shape
    N, _, H, W = x_nchw.shape
    Ho = (H + 2 * padding - kH) // stride + 1
    Wo = (W + 2 * padding - kW) // stride + 1

    # Conv bias cancels exactly under training-mode BatchNorm (only affects the
    # un-implemented running stats), so it is dropped from the fused path.
    del bias

    # --- wrapper-side layout prep (cheap XLA ops) -------------------------
    x_nhwc = jnp.transpose(x_nchw, (0, 2, 3, 1)).astype(jnp.bfloat16)
    x_pad = jnp.pad(x_nhwc,
                    ((0, 0), (padding, padding), (padding, padding), (0, 0)))

    # im2col with plain strided slices (no zero-insertion, no scatter).
    cols = []
    for kh in range(kH):
        for kw in range(kW):
            cols.append(lax.slice(
                x_pad,
                (0, kh, kw, 0),
                (N, kh + (Ho - 1) * stride + 1, kw + (Wo - 1) * stride + 1, Cin),
                (1, stride, stride, 1)))
    K = kH * kW * Cin
    patches = jnp.concatenate(cols, axis=-1).reshape(N * Ho * Wo, K)

    # Row tiling: pad rows to a multiple of the tile. Zero rows add 0 to
    # sum/sumsq (stats divide by the real M) and are sliced off afterwards.
    M = N * Ho * Wo
    tm = min(512, _round_up(M, 8))
    Mp = _round_up(M, tm)
    T = Mp // tm
    patches = jnp.pad(patches, ((0, Mp - M), (0, 0)))

    # Weight -> (K, Cout) matching the (kh, kw, cin) patch ordering; lane-pad
    # Cout to a multiple of 128 for unmasked, lane-dense output stores.
    Cp = _round_up(Cout, 128)
    w2 = jnp.transpose(w_pt, (2, 3, 1, 0)).reshape(K, Cout).astype(jnp.bfloat16)
    w2 = jnp.pad(w2, ((0, 0), (0, Cp - Cout)))
    g2 = jnp.pad(gamma.reshape(1, Cout).astype(jnp.float32),
                 ((0, 0), (0, Cp - Cout)), constant_values=1.0)
    b2 = jnp.pad(beta.reshape(1, Cout).astype(jnp.float32),
                 ((0, 0), (0, Cp - Cout)))

    kernel = functools.partial(convres_kernel, m_true=float(M),
                               activation=activation)

    out2d = pl.pallas_call(
        kernel,
        out_shape=jax.ShapeDtypeStruct((Mp, Cp), jnp.float32),
        grid=(2, T),  # (phase, row tiles); phase-major iteration
        in_specs=[
            pl.BlockSpec((tm, K), lambda ph, t: (t, 0)),
            pl.BlockSpec((K, Cp), lambda ph, t: (0, 0)),
            pl.BlockSpec((1, Cp), lambda ph, t: (0, 0)),
            pl.BlockSpec((1, Cp), lambda ph, t: (0, 0)),
        ],
        # ph*t keeps the output block index non-decreasing: nothing is written
        # back during the stats phase and each block is written exactly once.
        out_specs=pl.BlockSpec((tm, Cp), lambda ph, t: (ph * t, 0)),
        scratch_shapes=[pltpu.VMEM((1, Cp), jnp.float32),
                        pltpu.VMEM((1, Cp), jnp.float32)],
        compiler_params=pltpu.CompilerParams(
            # Global BN reduction + phase ordering -> sequential grid axes.
            dimension_semantics=("arbitrary", "arbitrary"),
            # Explicit limit; tiles are small, safe on v7x's 64 MiB VMEM too.
            vmem_limit_bytes=48 * 1024 * 1024,
        ),
    )(patches, w2, g2, b2)

    out = out2d[:M, :Cout].reshape(N, Ho, Wo, Cout)
    return jnp.transpose(out, (0, 3, 1, 2))


def reference(x_nchw, w_pt, bias, gamma, beta, *, stride, padding,
              activation="leaky_relu"):
    """Pure-JAX f32 reference of the same forward pass (for validation)."""
    x_nhwc = jnp.transpose(x_nchw, (0, 2, 3, 1))
    w_hwio = jnp.transpose(w_pt, (2, 3, 1, 0))
    y = lax.conv_general_dilated(
        x_nhwc, w_hwio, window_strides=(stride, stride),
        padding=[(padding, padding), (padding, padding)],
        dimension_numbers=("NHWC", "HWIO", "NHWC"),
        precision=lax.Precision.HIGHEST)
    y = y + bias[None, None, None, :]
    mean = jnp.mean(y, axis=(0, 1, 2))
    var = jnp.mean((y - mean) ** 2, axis=(0, 1, 2))
    yn = (y - mean) / jnp.sqrt(var + BN_EPS)
    yn = yn * gamma + beta
    if activation == "leaky_relu":
        out = jnp.where(yn >= 0.0, yn, LEAKY_SLOPE * yn)
    else:
        out = jnp.tanh(yn)
    return jnp.transpose(out, (0, 3, 1, 2))


if __name__ == "__main__":
    # ConvRes(ch_in=4, ch_out=8, kernel_size=4, stride=2, padding=1,
    #         bias=True, res_enable=False, activation='leaky_relu')
    ch_in, ch_out = 4, 8
    kernel_size, stride, padding = 4, 2, 1
    N, H, W = 2, 16, 16

    key = jax.random.PRNGKey(0)
    kx, kw, kb, kg, kbt = jax.random.split(key, 5)

    x = jax.random.normal(kx, (N, ch_in, H, W), jnp.float32)
    w = 0.1 * jax.random.normal(
        kw, (ch_out, ch_in, kernel_size, kernel_size), jnp.float32)
    b = 0.1 * jax.random.normal(kb, (ch_out,), jnp.float32)
    gamma = 1.0 + 0.1 * jax.random.normal(kg, (ch_out,), jnp.float32)
    beta = 0.1 * jax.random.normal(kbt, (ch_out,), jnp.float32)

    out = conv_res_forward(x, w, b, gamma, beta,
                           stride=stride, padding=padding,
                           activation="leaky_relu")
    out = jax.block_until_ready(out)

    ref = reference(x, w, b, gamma, beta,
                    stride=stride, padding=padding,
                    activation="leaky_relu")

    Ho = (H + 2 * padding - kernel_size) // stride + 1
    assert out.shape == (N, ch_out, Ho, Ho), out.shape
    max_err = float(jnp.max(jnp.abs(out - ref)))
    # bf16 MXU operands vs f32 reference: tolerance-aware comparison.
    assert jnp.allclose(out, ref, atol=2e-2, rtol=2e-2), max_err

    # TODO(synk): res_enable=True residual branch (Identity / 1x1 Conv2d) and
    # BatchNorm2d running_mean/running_var updates (training-mode side effect)
    # are not implemented in this fused forward kernel.
    print("KERNEL_OK")
</pallas_src>

<mosaic_0001>
module attributes {stable_mosaic.version = 11 : i64} {
  func.func @convres_kernel(%arg0: i32, %arg1: i32, %arg2: memref<128x64xbf16, #tpu.memory_space<vmem>>, %arg3: memref<64x128xbf16, #tpu.memory_space<vmem>>, %arg4: memref<1x128xf32, #tpu.memory_space<vmem>>, %arg5: memref<1x128xf32, #tpu.memory_space<vmem>>, %arg6: memref<128x128xf32, #tpu.memory_space<vmem>>, %arg7: memref<1x128xf32, #tpu.memory_space<vmem>>, %arg8: memref<1x128xf32, #tpu.memory_space<vmem>>) attributes {dimension_semantics = [#tpu.dimension_semantics<arbitrary>, #tpu.dimension_semantics<arbitrary>], iteration_bounds = array<i64: 2, 1>, scalar_prefetch = 0 : i64, scratch_operands = 2 : i64, tpu.core_type = #tpu.core_type<tc>, window_params = [{transform_indices = @transform_0, window_bounds = array<i64: 128, 64>}, {pipeline_mode = #tpu.pipeline_mode<synchronous>, transform_indices = @transform_1, window_bounds = array<i64: 64, 128>}, {pipeline_mode = #tpu.pipeline_mode<synchronous>, transform_indices = @transform_2, window_bounds = array<i64: 1, 128>}, {pipeline_mode = #tpu.pipeline_mode<synchronous>, transform_indices = @transform_3, window_bounds = array<i64: 1, 128>}, {transform_indices = @transform_4, window_bounds = array<i64: 128, 128>}]} {
    %c0 = arith.constant 0 : index
    %c0_0 = arith.constant 0 : index
    %0 = vector.load %arg2[%c0, %c0_0] : memref<128x64xbf16, #tpu.memory_space<vmem>>, vector<128x64xbf16>
    %c0_1 = arith.constant 0 : index
    %c0_2 = arith.constant 0 : index
    %1 = vector.load %arg3[%c0_1, %c0_2] : memref<64x128xbf16, #tpu.memory_space<vmem>>, vector<64x128xbf16>
    %cst = arith.constant dense<0.000000e+00> : vector<128x128xf32>
    %2 = tpu.matmul %0, %1, %cst {dimension_numbers = #tpu.dot_dimension_numbers<[1], [0], [0], [1], [0, 0, 1, 1], [], []>} : vector<128x64xbf16>, vector<64x128xbf16>, vector<128x128xf32> -> vector<128x128xf32>
    %c0_i32 = arith.constant 0 : i32
    %3 = arith.cmpi eq, %arg0, %c0_i32 : i32
    %c0_i32_3 = arith.constant 0 : i32
    %4 = arith.cmpi eq, %arg1, %c0_i32_3 : i32
    %5 = arith.andi %3, %4 : i1
    %6 = arith.extui %5 : i1 to i32
    %c0_i32_4 = arith.constant 0 : i32
    %7 = arith.cmpi ne, %6, %c0_i32_4 : i32
    scf.if %7 {
      %cst_8 = arith.constant 0.000000e+00 : f32
      %14 = vector.broadcast %cst_8 : f32 to vector<1x128xf32>
      %c0_9 = arith.constant 0 : index
      %c0_10 = arith.constant 0 : index
      %15 = vector.load %arg7[%c0_9, %c0_10] : memref<1x128xf32, #tpu.memory_space<vmem>>, vector<1x128xf32>
      tpu.vector_store %arg7[%c0_9, %c0_10], %14 {strides = array<i32>} : memref<1x128xf32, #tpu.memory_space<vmem>>, vector<1x128xf32>,
      %cst_11 = arith.constant 0.000000e+00 : f32
      %16 = vector.broadcast %cst_11 : f32 to vector<1x128xf32>
      %c0_12 = arith.constant 0 : index
      %c0_13 = arith.constant 0 : index
      %17 = vector.load %arg8[%c0_12, %c0_13] : memref<1x128xf32, #tpu.memory_space<vmem>>, vector<1x128xf32>
      tpu.vector_store %arg8[%c0_12, %c0_13], %16 {strides = array<i32>} : memref<1x128xf32, #tpu.memory_space<vmem>>, vector<1x128xf32>,
    } else {
    }
    %c0_i32_5 = arith.constant 0 : i32
    %8 = arith.cmpi eq, %arg0, %c0_i32_5 : i32
    %9 = arith.extui %8 : i1 to i32
    %c0_i32_6 = arith.constant 0 : i32
    %10 = arith.cmpi ne, %9, %c0_i32_6 : i32
    scf.if %10 {
      %c0_8 = arith.constant 0 : index
      %c0_9 = arith.constant 0 : index
      %14 = vector.load %arg7[%c0_8, %c0_9] : memref<1x128xf32, #tpu.memory_space<vmem>>, vector<1x128xf32>
      %cst_10 = arith.constant dense<0.000000e+00> : vector<128xf32>
      %15 = vector.multi_reduction <add>, %2, %cst_10 [0] : vector<128x128xf32> to vector<128xf32>
      %16 = vector.shape_cast %15 : vector<128xf32> to vector<1x128xf32>
      %17 = arith.addf %14, %16 : vector<1x128xf32>
      %c0_11 = arith.constant 0 : index
      %c0_12 = arith.constant 0 : index
      %18 = vector.load %arg7[%c0_11, %c0_12] : memref<1x128xf32, #tpu.memory_space<vmem>>, vector<1x128xf32>
      tpu.vector_store %arg7[%c0_11, %c0_12], %17 {strides = array<i32>} : memref<1x128xf32, #tpu.memory_space<vmem>>, vector<1x128xf32>,
      %c0_13 = arith.constant 0 : index
      %c0_14 = arith.constant 0 : index
      %19 = vector.load %arg8[%c0_13, %c0_14] : memref<1x128xf32, #tpu.memory_space<vmem>>, vector<1x128xf32>
      %20 = arith.mulf %2, %2 : vector<128x128xf32>
      %cst_15 = arith.constant dense<0.000000e+00> : vector<128xf32>
      %21 = vector.multi_reduction <add>, %20, %cst_15 [0] : vector<128x128xf32> to vector<128xf32>
      %22 = vector.shape_cast %21 : vector<128xf32> to vector<1x128xf32>
      %23 = arith.addf %19, %22 : vector<1x128xf32>
      %c0_16 = arith.constant 0 : index
      %c0_17 = arith.constant 0 : index
      %24 = vector.load %arg8[%c0_16, %c0_17] : memref<1x128xf32, #tpu.memory_space<vmem>>, vector<1x128xf32>
      tpu.vector_store %arg8[%c0_16, %c0_17], %23 {strides = array<i32>} : memref<1x128xf32, #tpu.memory_space<vmem>>, vector<1x128xf32>,
    } else {
    }
    %c1_i32 = arith.constant 1 : i32
    %11 = arith.cmpi eq, %arg0, %c1_i32 : i32
    %12 = arith.extui %11 : i1 to i32
    %c0_i32_7 = arith.constant 0 : i32
    %13 = arith.cmpi ne, %12, %c0_i32_7 : i32
    scf.if %13 {
      %c0_8 = arith.constant 0 : index
      %c0_9 = arith.constant 0 : index
      %14 = vector.load %arg7[%c0_8, %c0_9] : memref<1x128xf32, #tpu.memory_space<vmem>>, vector<1x128xf32>
      %cst_10 = arith.constant 7.812500e-03 : f32
      %15 = vector.broadcast %cst_10 : f32 to vector<1x128xf32>
      %16 = arith.mulf %14, %15 : vector<1x128xf32>
      %c0_11 = arith.constant 0 : index
      %c0_12 = arith.constant 0 : index
      %17 = vector.load %arg8[%c0_11, %c0_12] : memref<1x128xf32, #tpu.memory_space<vmem>>, vector<1x128xf32>
      %cst_13 = arith.constant 7.812500e-03 : f32
      %18 = vector.broadcast %cst_13 : f32 to vector<1x128xf32>
      %19 = arith.mulf %17, %18 : vector<1x128xf32>
      %20 = arith.mulf %16, %16 : vector<1x128xf32>
      %21 = arith.subf %19, %20 : vector<1x128xf32>
      %cst_14 = arith.constant 0.000000e+00 : f32
      %22 = vector.broadcast %cst_14 : f32 to vector<1x128xf32>
      %23 = arith.maximumf %21, %22 : vector<1x128xf32>
      %c0_15 = arith.constant 0 : index
      %c0_16 = arith.constant 0 : index
      %24 = vector.load %arg4[%c0_15, %c0_16] : memref<1x128xf32, #tpu.memory_space<vmem>>, vector<1x128xf32>
      %cst_17 = arith.constant 9.99999974E-6 : f32
      %25 = vector.broadcast %cst_17 : f32 to vector<1x128xf32>
      %26 = arith.addf %23, %25 : vector<1x128xf32>
      %27 = math.rsqrt %26 : vector<1x128xf32>
      %28 = arith.mulf %24, %27 : vector<1x128xf32>
      %c0_18 = arith.constant 0 : index
      %c0_19 = arith.constant 0 : index
      %29 = vector.load %arg5[%c0_18, %c0_19] : memref<1x128xf32, #tpu.memory_space<vmem>>, vector<1x128xf32>
      %30 = arith.mulf %16, %28 : vector<1x128xf32>
      %31 = arith.subf %29, %30 : vector<1x128xf32>
      %32 = vector.broadcast %28 : vector<1x128xf32> to vector<128x128xf32>
      %33 = arith.mulf %2, %32 : vector<128x128xf32>
      %34 = vector.broadcast %31 : vector<1x128xf32> to vector<128x128xf32>
      %35 = arith.addf %33, %34 : vector<128x128xf32>
      %cst_20 = arith.constant 0.000000e+00 : f32
      %36 = vector.broadcast %cst_20 : f32 to vector<128x128xf32>
      %37 = arith.cmpf oge, %35, %36 : vector<128x128xf32>
      %cst_21 = arith.constant 0.00999999977 : f32
      %38 = vector.broadcast %cst_21 : f32 to vector<128x128xf32>
      %39 = arith.mulf %38, %35 : vector<128x128xf32>
      %40 = arith.select %37, %35, %39 : vector<128x128xi1>, vector<128x128xf32>
      %c0_22 = arith.constant 0 : index
      %c0_23 = arith.constant 0 : index
      %41 = vector.load %arg6[%c0_22, %c0_23] : memref<128x128xf32, #tpu.memory_space<vmem>>, vector<128x128xf32>
      tpu.vector_store %arg6[%c0_22, %c0_23], %40 {strides = array<i32>} : memref<128x128xf32, #tpu.memory_space<vmem>>, vector<128x128xf32>,
    } else {
    }
    return
  }
  func.func @transform_0(%arg0: i32, %arg1: i32) -> (i32, i32) {
    %c0_i32 = arith.constant 0 : i32
    %c0_i32_0 = arith.constant 0 : i32
    return %arg1, %c0_i32 : i32, i32
  }
  func.func @transform_1(%arg0: i32, %arg1: i32) -> (i32, i32) {
    %c0_i32 = arith.constant 0 : i32
    %c0_i32_0 = arith.constant 0 : i32
    %c0_i32_1 = arith.constant 0 : i32
    return %c0_i32, %c0_i32_0 : i32, i32
  }
  func.func @transform_2(%arg0: i32, %arg1: i32) -> (i32, i32) {
    %c0_i32 = arith.constant 0 : i32
    %c0_i32_0 = arith.constant 0 : i32
    %c0_i32_1 = arith.constant 0 : i32
    return %c0_i32, %c0_i32_0 : i32, i32
  }
  func.func @transform_3(%arg0: i32, %arg1: i32) -> (i32, i32) {
    %c0_i32 = arith.constant 0 : i32
    %c0_i32_0 = arith.constant 0 : i32
    %c0_i32_1 = arith.constant 0 : i32
    return %c0_i32, %c0_i32_0 : i32, i32
  }
  func.func @transform_4(%arg0: i32, %arg1: i32) -> (i32, i32) {
    %0 = arith.muli %arg0, %arg1 : i32
    %c0_i32 = arith.constant 0 : i32
    %c0_i32_0 = arith.constant 0 : i32
    return %0, %c0_i32 : i32, i32
  }
}

</mosaic_0001>

<llo_original>
// kernel: conv_res_forward.1
$region0: #{conv_res_forward.1}
  #allocation0 [shape = 'u32[]', space=smem, size = 0x4, offset = 0x4, fixed_abs, tag = 'smem constant byte address 0x4 - core index']
  #allocation1 [shape = 'u32[144,128]{1,0:T(1,128)}', space=vmem, size = 0x12000, scoped, tag = 'internal scratch']
  #allocation2 [shape = 'f32[1,128]{1,0:T(1,128)}', space=vmem, size = 0x200, scoped, tag = 'scratch operand']
  #allocation3 [shape = 'f32[1,128]{1,0:T(1,128)}', space=vmem, size = 0x200, scoped, tag = 'scratch operand']
  %s0 = inlined_call_operand.vmem [shape: bf16[128,64], index: 0, kind: input, shape index: {}]
  %s1 = inlined_call_operand.vmem [shape: bf16[64,128], index: 1, kind: input, shape index: {}]
  %s2 = inlined_call_operand.vmem [shape: f32[1,128], index: 2, kind: input, shape index: {}]
  %s3 = inlined_call_operand.vmem [shape: f32[1,128], index: 3, kind: input, shape index: {}]
  %s4 = inlined_call_operand.vmem [shape: f32[128,128], index: 4, kind: output, shape index: {}]
  %s5 = sld [smem:[#allocation0]]
  $region61: #{conv_res_forward.1} parent=0
    _
  %s7 = ssub.s32 1, %s5
  %s8 = scalar_select 0, %s7, %s5
  loop: start=0, step=1, limit=4
  $region2: #{conv_res_forward.1} parent=0 // loop_pre_header
    _
  $region3: #{conv_res_forward.1} parent=0 // loop_header
    %s10 = sphi 0, %s14
    %p11 = scmp.ge.s32.totalorder %s10, 4
    %s17 = sphi 0, %s29
    %s18 = sphi 0, %s25
    %s19 = sphi 0, %s17
    %s20 = sphi 0, %s18
    %s21 = sphi 0, %s19
    %s22 = sphi 0, %s20
    %s32 = sphi 0, %s34
    %s35 = sphi 0, %s32
    %s36 = sphi 0, %s35
    %s52 = sphi 0, %s36
    %s56 = sphi 0, %s56
    %s58 = sphi 0, %s56
    %s59 = sphi 0, %s58
    %s73 = sphi 0, %s59
    %s77 = sphi 0, %s77
    %s79 = sphi 0, %s77
    %s80 = sphi 0, %s79
    %s94 = sphi 0, %s80
    %s98 = sphi 0, %s98
    %s100 = sphi 0, %s98
    %s101 = sphi 0, %s100
    %s115 = sphi 0, %s101
    %s123 = sphi 0, %s125
    %s126 = sphi 0, %s123
    %s127 = sphi 0, %s126
    %s143 = sphi 0, %s127
  $region4: #{conv_res_forward.1} parent=0 // loop_header_branch
    %13 = sbr.rel (%p11) target = $region8
  $region5: #{conv_res_forward.1} parent=0 // loop_body
    %s15 = ssub.s32 %s10, 1
    %s16 = ssub.s32 %s10, 2
    %s23 = sadd.s32 1, %s18
    %p24 = scmp.ge.s32.totalorder %s23, 1
    %s25 = scalar_select %p24, 0, %s23
    %s26 = sadd.s32 1, %s17
    %s27 = scalar_select %p24, %s26, %s17
    %p28 = scmp.ge.s32.totalorder %s27, 2
    %s29 = scalar_select %p28, 0, %s27
    %s30 = ssub.s32 %s18, %s25
    %p31 = scmp.eq.s32.totalorder %s30, 0
    %s33 = sadd.s32 %s32, 1
    %s34 = scalar_select %p31, %s32, %s33
    %p37 = pneg %p31
    %p38 = scmp.eq.s32.totalorder %s10, 1
    %p39 = por %p37, %p38
    %p40 = scmp.ne.s32.totalorder %s32, %s35
    %p41 = scmp.eq.s32.totalorder %s10, 0
    %p42 = por %p40, %p41
    %p43 = scmp.ne.s32.totalorder %s32, %s35
    %p44 = scmp.eq.s32.totalorder %s15, 1
    %p45 = por %p43, %p44
    %p46 = scmp.ne.s32.totalorder %s35, %s36
    %p47 = scmp.eq.s32.totalorder %s15, 0
    %p48 = por %p46, %p47
    %p49 = scmp.ne.s32.totalorder %s35, %s36
    %p50 = scmp.eq.s32.totalorder %s16, 1
    %p51 = por %p49, %p50
    %p53 = scmp.ne.s32.totalorder %s36, %s52
    %p54 = scmp.eq.s32.totalorder %s16, 0
    %p55 = por %p53, %p54
    %s57 = sadd.s32 %s56, 1
    %p60 = scmp.eq.s32.totalorder %s10, 1
    %p61 = scmp.ne.s32.totalorder %s56, %s58
    %p62 = scmp.eq.s32.totalorder %s10, 0
    %p63 = por %p61, %p62
    %p64 = scmp.ne.s32.totalorder %s56, %s58
    %p65 = scmp.eq.s32.totalorder %s15, 1
    %p66 = por %p64, %p65
    %p67 = scmp.ne.s32.totalorder %s58, %s59
    %p68 = scmp.eq.s32.totalorder %s15, 0
    %p69 = por %p67, %p68
    %p70 = scmp.ne.s32.totalorder %s58, %s59
    %p71 = scmp.eq.s32.totalorder %s16, 1
    %p72 = por %p70, %p71
    %p74 = scmp.ne.s32.totalorder %s59, %s73
    %p75 = scmp.eq.s32.totalorder %s16, 0
    %p76 = por %p74, %p75
    %s78 = sadd.s32 %s77, 1
    %p81 = scmp.eq.s32.totalorder %s10, 1
    %p82 = scmp.ne.s32.totalorder %s77, %s79
    %p83 = scmp.eq.s32.totalorder %s10, 0
    %p84 = por %p82, %p83
    %p85 = scmp.ne.s32.totalorder %s77, %s79
    %p86 = scmp.eq.s32.totalorder %s15, 1
    %p87 = por %p85, %p86
    %p88 = scmp.ne.s32.totalorder %s79, %s80
    %p89 = scmp.eq.s32.totalorder %s15, 0
    %p90 = por %p88, %p89
    %p91 = scmp.ne.s32.totalorder %s79, %s80
    %p92 = scmp.eq.s32.totalorder %s16, 1
    %p93 = por %p91, %p92
    %p95 = scmp.ne.s32.totalorder %s80, %s94
    %p96 = scmp.eq.s32.totalorder %s16, 0
    %p97 = por %p95, %p96
    %s99 = sadd.s32 %s98, 1
    %p102 = scmp.eq.s32.totalorder %s10, 1
    %p103 = scmp.ne.s32.totalorder %s98, %s100
    %p104 = scmp.eq.s32.totalorder %s10, 0
    %p105 = por %p103, %p104
    %p106 = scmp.ne.s32.totalorder %s98, %s100
    %p107 = scmp.eq.s32.totalorder %s15, 1
    %p108 = por %p106, %p107
    %p109 = scmp.ne.s32.totalorder %s100, %s101
    %p110 = scmp.eq.s32.totalorder %s15, 0
    %p111 = por %p109, %p110
    %p112 = scmp.ne.s32.totalorder %s100, %s101
    %p113 = scmp.eq.s32.totalorder %s16, 1
    %p114 = por %p112, %p113
    %p116 = scmp.ne.s32.totalorder %s101, %s115
    %p117 = scmp.eq.s32.totalorder %s16, 0
    %p118 = por %p116, %p117
    %s119 = smul.u32 %s17, %s18
    %s120 = smul.u32 %s29, %s25
    %s121 = ssub.s32 %s119, %s120
    %p122 = scmp.eq.s32.totalorder %s121, 0
    %s124 = sadd.s32 %s123, 1
    %s125 = scalar_select %p122, %s123, %s124
    %p128 = pneg %p122
    %p129 = scmp.eq.s32.totalorder %s10, 1
    %p130 = por %p128, %p129
    %p131 = scmp.ne.s32.totalorder %s123, %s126
    %p132 = scmp.eq.s32.totalorder %s10, 0
    %p133 = por %p131, %p132
    %p134 = scmp.ne.s32.totalorder %s123, %s126
    %p135 = scmp.eq.s32.totalorder %s15, 1
    %p136 = por %p134, %p135
    %p137 = scmp.ne.s32.totalorder %s126, %s127
    %p138 = scmp.eq.s32.totalorder %s15, 0
    %p139 = por %p137, %p138
    %p140 = scmp.ne.s32.totalorder %s126, %s127
    %p141 = scmp.eq.s32.totalorder %s16, 1
    %p142 = por %p140, %p141
    %p144 = scmp.ne.s32.totalorder %s127, %s143
    %p145 = scmp.eq.s32.totalorder %s16, 0
    %p146 = por %p144, %p145
    %p147 = scmp.le.s32.totalorder 1, %s10
    %p148 = scmp.lt.s32.totalorder %s10, 3
    %p149 = pnand %p147, %p148
    %p150 = pneg %p149
    // Predicated region
    $region9: #{conv_res_forward.1} parent=5 // pred_check
      _
    $region10: #{conv_res_forward.1} parent=5 // pred_check_branch
      %152 = sbr.rel (%p149) target = $region12
    $region11: #{conv_res_forward.1} parent=5 // pred_region
      %s153 = ssub.s32 %s10, 1
      // Predicated region
      $region13: #{conv_res_forward.1} parent=11 // pred_check
        %p154 = pneg %p48
      $region14: #{conv_res_forward.1} parent=11 // pred_check_branch
        %156 = sbr.rel (%p154) target = $region16
      $region15: #{conv_res_forward.1} parent=11 // pred_region
        %s157 = smul.u32 16, %s20
        %p158 = scmp.lt.s32.totalorder %s157, 15
        %s159 = scalar_select %p158, %s157, 15
        %s160 = smul.addr %s159, 4
        %s161 = scalar_lea.vmem %s0, %s160
        %s162 = smul.u32 16, %s20
      $region16: #{conv_res_forward.1} parent=11 // pred_fallthru
        _
      // Predicated region
      $region17: #{conv_res_forward.1} parent=11 // pred_check
        %p163 = pneg %p69
      $region18: #{conv_res_forward.1} parent=11 // pred_check_branch
        %165 = sbr.rel (%p163) target = $region20
      $region19: #{conv_res_forward.1} parent=11 // pred_region
        _
      $region20: #{conv_res_forward.1} parent=11 // pred_fallthru
        _
      // Predicated region
      $region21: #{conv_res_forward.1} parent=11 // pred_check
        %p166 = pneg %p90
      $region22: #{conv_res_forward.1} parent=11 // pred_check_branch
        %168 = sbr.rel (%p166) target = $region24
      $region23: #{conv_res_forward.1} parent=11 // pred_region
        _
      $region24: #{conv_res_forward.1} parent=11 // pred_fallthru
        _
      // Predicated region
      $region25: #{conv_res_forward.1} parent=11 // pred_check
        %p169 = pneg %p111
      $region26: #{conv_res_forward.1} parent=11 // pred_check_branch
        %171 = sbr.rel (%p169) target = $region28
      $region27: #{conv_res_forward.1} parent=11 // pred_region
        _
      $region28: #{conv_res_forward.1} parent=11 // pred_fallthru
        _
    $region12: #{conv_res_forward.1} parent=5 // pred_fallthru
      _
    %p172 = scmp.lt.s32.totalorder %s10, 2
    // Predicated region
    $region29: #{conv_res_forward.1} parent=5 // pred_check
      %p173 = pneg %p172
    $region30: #{conv_res_forward.1} parent=5 // pred_check_branch
      %175 = sbr.rel (%p173) target = $region32
    $region31: #{conv_res_forward.1} parent=5 // pred_region
      _
    $region32: #{conv_res_forward.1} parent=5 // pred_fallthru
      _
    %p176 = scmp.le.s32.totalorder 1, %s10
    %p177 = scmp.lt.s32.totalorder %s10, 3
    %p178 = pnand %p176, %p177
    %p179 = pneg %p178
    // Predicated region
    $region33: #{conv_res_forward.1} parent=5 // pred_check
      _
    $region34: #{conv_res_forward.1} parent=5 // pred_check_branch
      %181 = sbr.rel (%p178) target = $region36
    $region35: #{conv_res_forward.1} parent=5 // pred_region
      %s182 = ssub.s32 %s10, 1
      %s183 = smul.u32 16, %s20
      %p184 = scmp.lt.s32.totalorder %s183, 15
      %s185 = scalar_select %p184, %s183, 15
      %s186 = smul.addr %s185, 4
      %s187 = scalar_lea.vmem %s0, %s186
      %p188 = pneg %p48
      %p189 = pneg %p45
      %p190 = pneg %p69
      %p191 = pneg %p66
      %p192 = pneg %p90
      %p193 = pneg %p87
      %p194 = pneg %p111
      %p195 = pneg %p108
      %p196 = pneg %p139
      %p197 = pneg %p136
      %s198 = smul.u32 %s19, %s20
      %s199 = smul.u32 16, %s198
      %p200 = scmp.lt.s32.totalorder %s199, 15
      %s201 = scalar_select %p200, %s199, 15
      %s202 = smul.addr %s201, 8
      %s203 = scalar_lea.vmem %s4, %s202
      %s204 = smul.u32 16, %s20
      %p205 = scmp.lt.s32.totalorder %s204, 15
      %s206 = scalar_select %p205, %s204, 15
      %s207 = smul.addr %s206, 4
      %s208 = scalar_lea.vmem %s0, %s207
      %s209 = smul.u32 16, %s20
      %s210 = smul.u32 %s19, %s20
      %s211 = smul.u32 16, %s210
      %p212 = scmp.lt.s32.totalorder %s211, 15
      %s213 = scalar_select %p212, %s211, 15
      %s214 = smul.addr %s213, 8
      %s215 = scalar_lea.vmem %s4, %s214
      %s216 = smul.u32 %s19, %s20
      %s217 = smul.u32 16, %s216
      %v219 = vld [vmem:[%s208] sm:$0xf]
      %v220 = vld [vmem:[%s208 + $0x4] sm:$0xf]
      %v221 = vld [vmem:[%s208 + $0x8] sm:$0xf]
      %v222 = vld [vmem:[%s208 + $0xc] sm:$0xf]
      %v223 = vld [vmem:[%s208 + $0x10] sm:$0xf]
      %v224 = vld [vmem:[%s208 + $0x14] sm:$0xf]
      %v225 = vld [vmem:[%s208 + $0x18] sm:$0xf]
      %v226 = vld [vmem:[%s208 + $0x1c] sm:$0xf]
      %v227 = vld [vmem:[%s208 + $0x20] sm:$0xf]
      %v228 = vld [vmem:[%s208 + $0x24] sm:$0xf]
      %v229 = vld [vmem:[%s208 + $0x28] sm:$0xf]
      %v230 = vld [vmem:[%s208 + $0x2c] sm:$0xf]
      %v231 = vld [vmem:[%s208 + $0x30] sm:$0xf]
      %v232 = vld [vmem:[%s208 + $0x34] sm:$0xf]
      %v233 = vld [vmem:[%s208 + $0x38] sm:$0xf]
      %v234 = vld [vmem:[%s208 + $0x3c] sm:$0xf]
      %v235 = vld [vmem:[%s1] sm:$0xf]
      %v236 = vld [vmem:[%s1 + $0x4] sm:$0xf]
      %v237 = vld [vmem:[%s1 + $0x8] sm:$0xf]
      %v238 = vld [vmem:[%s1 + $0xc] sm:$0xf]
      %v239 = vld [vmem:[%s1 + $0x10] sm:$0xf]
      %v240 = vld [vmem:[%s1 + $0x14] sm:$0xf]
      %v241 = vld [vmem:[%s1 + $0x18] sm:$0xf]
      %v242 = vld [vmem:[%s1 + $0x1c] sm:$0xf]
      %v259 = vunpack.c.l.b16 %v219
      %v260 = vunpack.c.l.b16 %v220
      %v261 = vunpack.c.l.b16 %v221
      %v262 = vunpack.c.l.b16 %v222
      %v263 = vunpack.c.l.b16 %v223
      %v264 = vunpack.c.l.b16 %v224
      %v265 = vunpack.c.l.b16 %v225
      %v266 = vunpack.c.l.b16 %v226
      %v267 = vunpack.c.l.b16 %v227
      %v268 = vunpack.c.l.b16 %v228
      %v269 = vunpack.c.l.b16 %v229
      %v270 = vunpack.c.l.b16 %v230
      %v271 = vunpack.c.l.b16 %v231
      %v272 = vunpack.c.l.b16 %v232
      %v273 = vunpack.c.l.b16 %v233
      %v274 = vunpack.c.l.b16 %v234
      %v275 = vpack.c.b16 %v260, %v259
      %v276 = vpack.c.b16 %v262, %v261
      %v277 = vpack.c.b16 %v264, %v263
      %v278 = vpack.c.b16 %v266, %v265
      %v279 = vpack.c.b16 %v268, %v267
      %v280 = vpack.c.b16 %v270, %v269
      %v281 = vpack.c.b16 %v272, %v271
      %v282 = vpack.c.b16 %v274, %v273
      %v291 = vunpack.c.l.b16 %v235
      %v292 = vunpack.c.l.b16 %v236
      %v293 = vunpack.c.l.b16 %v237
      %v294 = vunpack.c.l.b16 %v238
      %v295 = vunpack.c.l.b16 %v239
      %v296 = vunpack.c.l.b16 %v240
      %v297 = vunpack.c.l.b16 %v241
      %v298 = vunpack.c.l.b16 %v242
      %v299 = vpack.c.b16 %v292, %v291
      %v300 = vpack.c.b16 %v294, %v293
      %v301 = vpack.c.b16 %v296, %v295
      %v302 = vpack.c.b16 %v298, %v297
      %vm307 = vcmask 523264
      %v309 = vsel %vm307, %v275, 0
      %v312 = vsel %vm307, %v276, 0
      %v315 = vsel %vm307, %v277, 0
      %v318 = vsel %vm307, %v278, 0
      %v321 = vsel %vm307, %v279, 0
      %v324 = vsel %vm307, %v280, 0
      %v327 = vsel %vm307, %v281, 0
      %v330 = vsel %vm307, %v282, 0
      %332 = vmatprep.subr.bf16.mxu0 0
      %333 = vmatpush1.bf16.msra.mxu0 0
      %334 = vmatprep.subr.bf16.mxu0 0
      %335 = vmatpush1.bf16.msra.mxu0 0
      %336 = vmatprep.subr.bf16.mxu0 0
      %337 = vmatpush1.bf16.msra.mxu0 0
      %338 = vmatprep.subr.bf16.mxu0 0
      %339 = vmatpush1.bf16.msra.mxu0 0
      %340 = vmatprep.subr.bf16.mxu0 0
      %341 = vmatpush1.bf16.msra.mxu0 %v302
      %342 = vmatprep.subr.bf16.mxu0 0
      %343 = vmatpush1.bf16.msra.mxu0 %v301
      %344 = vmatprep.subr.bf16.mxu0 0
      %345 = vmatpush1.bf16.msra.mxu0 %v300
      %346 = vmatprep.subr.bf16.mxu0 0
      %347 = vmatpush1.bf16.msra.mxu0 %v299
      %348 = vmatprep.subr.bf16.mxu0 0
      %349 = vmatpush2.bf16.msra.mxu0 0
      %350 = vmatprep.subr.bf16.mxu0 0
      %351 = vmatpush2.bf16.msra.mxu0 0
      %352 = vmatprep.subr.bf16.mxu0 0
      %353 = vmatpush2.bf16.msra.mxu0 0
      %354 = vmatprep.subr.bf16.mxu0 0
      %355 = vmatpush2.bf16.msra.mxu0 0
      %356 = vmatprep.subr.bf16.mxu0 0
      %357 = vmatpush2.bf16.msra.mxu0 0
      %358 = vmatprep.subr.bf16.mxu0 0
      %359 = vmatpush2.bf16.msra.mxu0 0
      %360 = vmatprep.subr.bf16.mxu0 0
      %361 = vmatpush2.bf16.msra.mxu0 0
      %362 = vmatprep.subr.bf16.mxu0 0
      %363 = vmatpush2.bf16.msra.mxu0 0
      %364 = vmatprep.mubr.bf16.mxu0 0
      %365 = vmatmul.mubr.bf16.gmra.mxu0 %v309
      %v366 = vpop.f32.mrf.mxu0
      %v367 = vadd.f32 0.0, %v366
      %v368 = vpop.f32.mrf.mxu0
      %v369 = vpop.f32.mrf.mxu0
      %v370 = vadd.f32 0.0, %v369
      %v371 = vpop.f32.mrf.mxu0
      %372 = vmatprep.mubr.bf16.mxu0 0
      %373 = vmatmul.mubr.bf16.gmra.mxu0 %v312
      %v374 = vpop.f32.mrf.mxu0
      %v375 = vadd.f32 0.0, %v374
      %v376 = vpop.f32.mrf.mxu0
      %v377 = vpop.f32.mrf.mxu0
      %v378 = vadd.f32 0.0, %v377
      %v379 = vpop.f32.mrf.mxu0
      %380 = vmatprep.mubr.bf16.mxu0 0
      %381 = vmatmul.mubr.bf16.gmra.mxu0 %v315
      %v382 = vpop.f32.mrf.mxu0
      %v383 = vadd.f32 0.0, %v382
      %v384 = vpop.f32.mrf.mxu0
      %v385 = vpop.f32.mrf.mxu0
      %v386 = vadd.f32 0.0, %v385
      %v387 = vpop.f32.mrf.mxu0
      %388 = vmatprep.mubr.bf16.mxu0 0
      %389 = vmatmul.mubr.bf16.gmra.mxu0 %v318
      %v390 = vpop.f32.mrf.mxu0
      %v391 = vadd.f32 0.0, %v390
      %v392 = vpop.f32.mrf.mxu0
      %v393 = vpop.f32.mrf.mxu0
      %v394 = vadd.f32 0.0, %v393
      %v395 = vpop.f32.mrf.mxu0
      %396 = vmatprep.mubr.bf16.mxu0 0
      %397 = vmatmul.mubr.bf16.gmra.mxu0 %v321
      %v398 = vpop.f32.mrf.mxu0
      %v399 = vadd.f32 0.0, %v398
      %v400 = vpop.f32.mrf.mxu0
      %v401 = vpop.f32.mrf.mxu0
      %v402 = vadd.f32 0.0, %v401
      %v403 = vpop.f32.mrf.mxu0
      %404 = vmatprep.mubr.bf16.mxu0 0
      %405 = vmatmul.mubr.bf16.gmra.mxu0 %v324
      %v406 = vpop.f32.mrf.mxu0
      %v407 = vadd.f32 0.0, %v406
      %v408 = vpop.f32.mrf.mxu0
      %v409 = vpop.f32.mrf.mxu0
      %v410 = vadd.f32 0.0, %v409
      %v411 = vpop.f32.mrf.mxu0
      %412 = vmatprep.mubr.bf16.mxu0 0
      %413 = vmatmul.mubr.bf16.gmra.mxu0 %v327
      %v414 = vpop.f32.mrf.mxu0
      %v415 = vadd.f32 0.0, %v414
      %v416 = vpop.f32.mrf.mxu0
      %v417 = vpop.f32.mrf.mxu0
      %v418 = vadd.f32 0.0, %v417
      %v419 = vpop.f32.mrf.mxu0
      %420 = vmatprep.mubr.bf16.mxu0 0
      %421 = vmatmul.mubr.bf16.gmra.mxu0 %v330
      %v422 = vpop.f32.mrf.mxu0
      %v423 = vadd.f32 0.0, %v422
      %v424 = vpop.f32.mrf.mxu0
      %v425 = vpop.f32.mrf.mxu0
      %v426 = vadd.f32 0.0, %v425
      %v427 = vpop.f32.mrf.mxu0
      %428 = vdwg.mxu0
      %p429 = scmp.eq.s32.totalorder %s19, 0
      %p430 = scmp.eq.s32.totalorder %s20, 0
      %p431 = pnand %p429, %p430
      %p432 = pneg %p431
      // Predicated region
      $region37: #{conv_res_forward.1} parent=35 // pred_check
        _
      $region38: #{conv_res_forward.1} parent=35 // pred_check_branch
        %434 = sbr.rel (%p431) target = $region40
      $region39: #{conv_res_forward.1} parent=35 // pred_region
        %435 = vst [vmem:[#allocation2] sm:$0x1] 0.0
        %436 = vst [vmem:[#allocation3] sm:$0x1] 0.0
      $region40: #{conv_res_forward.1} parent=35 // pred_fallthru
        _
      // Predicated region
      $region41: #{conv_res_forward.1} parent=35 // pred_check
        %p437 = pneg %p429
      $region42: #{conv_res_forward.1} parent=35 // pred_check_branch
        %439 = sbr.rel (%p437) target = $region44
      $region43: #{conv_res_forward.1} parent=35 // pred_region
        %v440 = vld [vmem:[#allocation2] sm:$0x1]
        %v441 = vadd.f32 %v367, %v370
        %v442 = vadd.f32 %v441, %v375
        %v443 = vadd.f32 %v442, %v378
        %v444 = vadd.f32 %v443, %v383
        %v445 = vadd.f32 %v444, %v386
        %v446 = vadd.f32 %v445, %v391
        %v447 = vadd.f32 %v446, %v394
        %v448 = vadd.f32 %v447, %v399
        %v449 = vadd.f32 %v448, %v402
        %v450 = vadd.f32 %v449, %v407
        %v451 = vadd.f32 %v450, %v410
        %v452 = vadd.f32 %v451, %v415
        %v453 = vadd.f32 %v452, %v418
        %v454 = vadd.f32 %v453, %v423
        %v455 = vadd.f32 %v454, %v426
        %v456 = vrot.slane %v455, 4
        %v457 = vadd.f32 %v455, %v456
        %v458 = vrot.slane %v457, 2
        %v459 = vadd.f32 %v457, %v458
        %v460 = vrot.slane %v459, 1
        %v461 = vadd.f32 %v459, %v460
        %v462 = vadd.f32 %v440, %v461
        %463 = vst [vmem:[#allocation2] sm:$0x1] %v462
        %v464 = vld [vmem:[#allocation3] sm:$0x1]
        %v465 = vmul.f32 %v367, %v367
        %v466 = vmul.f32 %v370, %v370
        %v467 = vmul.f32 %v375, %v375
        %v468 = vmul.f32 %v378, %v378
        %v469 = vmul.f32 %v383, %v383
        %v470 = vmul.f32 %v386, %v386
        %v471 = vmul.f32 %v391, %v391
        %v472 = vmul.f32 %v394, %v394
        %v473 = vmul.f32 %v399, %v399
        %v474 = vmul.f32 %v402, %v402
        %v475 = vmul.f32 %v407, %v407
        %v476 = vmul.f32 %v410, %v410
        %v477 = vmul.f32 %v415, %v415
        %v478 = vmul.f32 %v418, %v418
        %v479 = vmul.f32 %v423, %v423
        %v480 = vmul.f32 %v426, %v426
        %v481 = vadd.f32 %v465, %v466
        %v482 = vadd.f32 %v481, %v467
        %v483 = vadd.f32 %v482, %v468
        %v484 = vadd.f32 %v483, %v469
        %v485 = vadd.f32 %v484, %v470
        %v486 = vadd.f32 %v485, %v471
        %v487 = vadd.f32 %v486, %v472
        %v488 = vadd.f32 %v487, %v473
        %v489 = vadd.f32 %v488, %v474
        %v490 = vadd.f32 %v489, %v475
        %v491 = vadd.f32 %v490, %v476
        %v492 = vadd.f32 %v491, %v477
        %v493 = vadd.f32 %v492, %v478
        %v494 = vadd.f32 %v493, %v479
        %v495 = vadd.f32 %v494, %v480
        %v496 = vrot.slane %v495, 4
        %v497 = vadd.f32 %v495, %v496
        %v498 = vrot.slane %v497, 2
        %v499 = vadd.f32 %v497, %v498
        %v500 = vrot.slane %v499, 1
        %v501 = vadd.f32 %v499, %v500
        %v502 = vadd.f32 %v464, %v501
        %503 = vst [vmem:[#allocation3] sm:$0x1] %v502
      $region44: #{conv_res_forward.1} parent=35 // pred_fallthru
        _
      %p504 = scmp.eq.s32.totalorder %s19, 1
      // Predicated region
      $region45: #{conv_res_forward.1} parent=35 // pred_check
        %p505 = pneg %p504
      $region46: #{conv_res_forward.1} parent=35 // pred_check_branch
        %507 = sbr.rel (%p505) target = $region48
      $region47: #{conv_res_forward.1} parent=35 // pred_region
        %v508 = vld [vmem:[#allocation2] sm:$0x1]
        %v509 = vmul.f32 %v508, 0.0078125
        %v510 = vld [vmem:[#allocation3] sm:$0x1]
        %v511 = vmul.f32 %v510, 0.0078125
        %v512 = vmul.f32 %v509, %v509
        %v513 = vsub.f32 %v511, %v512
        %v514 = vmax.f32 %v513, 0.0
        %v515 = vld [vmem:[%s2] sm:$0x1]
        %v516 = vadd.f32 %v514, 1e-05
        %v517 = vrsqrt.pop %v516
        %v518 = vmul.f32 %v515, %v517
        %v519 = vld [vmem:[%s3] sm:$0x1]
        %v520 = vmul.f32 %v509, %v518
        %v521 = vsub.f32 %v519, %v520
        %v523 = vlaneseq
        %v524 = vshrl.u32 %v523, 7
        %v525 = vsub.s32 0, %v524
        %v526 = vrot.slane %v518, %v525
        %v528 = vmul.f32 %v367, %v526
        %v529 = vmul.f32 %v370, %v526
        %v530 = vmul.f32 %v375, %v526
        %v531 = vmul.f32 %v378, %v526
        %v532 = vmul.f32 %v383, %v526
        %v533 = vmul.f32 %v386, %v526
        %v534 = vmul.f32 %v391, %v526
        %v535 = vmul.f32 %v394, %v526
        %v536 = vmul.f32 %v399, %v526
        %v537 = vmul.f32 %v402, %v526
        %v538 = vmul.f32 %v407, %v526
        %v539 = vmul.f32 %v410, %v526
        %v540 = vmul.f32 %v415, %v526
        %v541 = vmul.f32 %v418, %v526
        %v542 = vmul.f32 %v423, %v526
        %v543 = vmul.f32 %v426, %v526
        %v545 = vlaneseq
        %v546 = vshrl.u32 %v545, 7
        %v547 = vsub.s32 0, %v546
        %v548 = vrot.slane %v521, %v547
        %v550 = vadd.f32 %v528, %v548
        %v551 = vadd.f32 %v529, %v548
        %v552 = vadd.f32 %v530, %v548
        %v553 = vadd.f32 %v531, %v548
        %v554 = vadd.f32 %v532, %v548
        %v555 = vadd.f32 %v533, %v548
        %v556 = vadd.f32 %v534, %v548
        %v557 = vadd.f32 %v535, %v548
        %v558 = vadd.f32 %v536, %v548
        %v559 = vadd.f32 %v537, %v548
        %v560 = vadd.f32 %v538, %v548
        %v561 = vadd.f32 %v539, %v548
        %v562 = vadd.f32 %v540, %v548
        %v563 = vadd.f32 %v541, %v548
        %v564 = vadd.f32 %v542, %v548
        %v565 = vadd.f32 %v543, %v548
        %vm566 = vcmp.ge.f32.partialorder %v550, 0.0
        %vm567 = vcmp.ge.f32.partialorder %v551, 0.0
        %vm568 = vcmp.ge.f32.partialorder %v552, 0.0
        %vm569 = vcmp.ge.f32.partialorder %v553, 0.0
        %vm570 = vcmp.ge.f32.partialorder %v554, 0.0
        %vm571 = vcmp.ge.f32.partialorder %v555, 0.0
        %vm572 = vcmp.ge.f32.partialorder %v556, 0.0
        %vm573 = vcmp.ge.f32.partialorder %v557, 0.0
        %vm574 = vcmp.ge.f32.partialorder %v558, 0.0
        %vm575 = vcmp.ge.f32.partialorder %v559, 0.0
        %vm576 = vcmp.ge.f32.partialorder %v560, 0.0
        %vm577 = vcmp.ge.f32.partialorder %v561, 0.0
        %vm578 = vcmp.ge.f32.partialorder %v562, 0.0
        %vm579 = vcmp.ge.f32.partialorder %v563, 0.0
        %vm580 = vcmp.ge.f32.partialorder %v564, 0.0
        %vm581 = vcmp.ge.f32.partialorder %v565, 0.0
        %v582 = vmul.f32 %v550, 0.01
        %v583 = vmul.f32 %v551, 0.01
        %v584 = vmul.f32 %v552, 0.01
        %v585 = vmul.f32 %v553, 0.01
        %v586 = vmul.f32 %v554, 0.01
        %v587 = vmul.f32 %v555, 0.01
        %v588 = vmul.f32 %v556, 0.01
        %v589 = vmul.f32 %v557, 0.01
        %v590 = vmul.f32 %v558, 0.01
        %v591 = vmul.f32 %v559, 0.01
        %v592 = vmul.f32 %v560, 0.01
        %v593 = vmul.f32 %v561, 0.01
        %v594 = vmul.f32 %v562, 0.01
        %v595 = vmul.f32 %v563, 0.01
        %v596 = vmul.f32 %v564, 0.01
        %v597 = vmul.f32 %v565, 0.01
        %v598 = vsel %vm566, %v550, %v582
        %v599 = vsel %vm567, %v551, %v583
        %v600 = vsel %vm568, %v552, %v584
        %v601 = vsel %vm569, %v553, %v585
        %v602 = vsel %vm570, %v554, %v586
        %v603 = vsel %vm571, %v555, %v587
        %v604 = vsel %vm572, %v556, %v588
        %v605 = vsel %vm573, %v557, %v589
        %v606 = vsel %vm574, %v558, %v590
        %v607 = vsel %vm575, %v559, %v591
        %v608 = vsel %vm576, %v560, %v592
        %v609 = vsel %vm577, %v561, %v593
        %v610 = vsel %vm578, %v562, %v594
        %v611 = vsel %vm579, %v563, %v595
        %v612 = vsel %vm580, %v564, %v596
        %v613 = vsel %vm581, %v565, %v597
        %614 = vst [vmem:[%s215] sm:$0xff] %v598
        %615 = vst [vmem:[%s215 + $0x8] sm:$0xff] %v599
        %616 = vst [vmem:[%s215 + $0x10] sm:$0xff] %v600
        %617 = vst [vmem:[%s215 + $0x18] sm:$0xff] %v601
        %618 = vst [vmem:[%s215 + $0x20] sm:$0xff] %v602
        %619 = vst [vmem:[%s215 + $0x28] sm:$0xff] %v603
        %620 = vst [vmem:[%s215 + $0x30] sm:$0xff] %v604
        %621 = vst [vmem:[%s215 + $0x38] sm:$0xff] %v605
        %622 = vst [vmem:[%s215 + $0x40] sm:$0xff] %v606
        %623 = vst [vmem:[%s215 + $0x48] sm:$0xff] %v607
        %624 = vst [vmem:[%s215 + $0x50] sm:$0xff] %v608
        %625 = vst [vmem:[%s215 + $0x58] sm:$0xff] %v609
        %626 = vst [vmem:[%s215 + $0x60] sm:$0xff] %v610
        %627 = vst [vmem:[%s215 + $0x68] sm:$0xff] %v611
        %628 = vst [vmem:[%s215 + $0x70] sm:$0xff] %v612
        %629 = vst [vmem:[%s215 + $0x78] sm:$0xff] %v613
      $region48: #{conv_res_forward.1} parent=35 // pred_fallthru
        _
      %s630 = smul.u32 %s19, %s20
      %s631 = smul.u32 16, %s630
      %p632 = scmp.lt.s32.totalorder %s631, 15
      %s633 = scalar_select %p632, %s631, 15
      %s634 = smul.addr %s633, 8
      %s635 = scalar_lea.vmem %s4, %s634
      // Predicated region
      $region49: #{conv_res_forward.1} parent=35 // pred_check
        %p636 = pneg %p136
      $region50: #{conv_res_forward.1} parent=35 // pred_check_branch
        %638 = sbr.rel (%p636) target = $region52
      $region51: #{conv_res_forward.1} parent=35 // pred_region
        %s639 = smul.u32 %s19, %s20
        %s640 = smul.u32 16, %s639
      $region52: #{conv_res_forward.1} parent=35 // pred_fallthru
        _
    $region36: #{conv_res_forward.1} parent=5 // pred_fallthru
      _
    %p641 = scmp.le.s32.totalorder 2, %s10
    // Predicated region
    $region53: #{conv_res_forward.1} parent=5 // pred_check
      %p642 = pneg %p641
    $region54: #{conv_res_forward.1} parent=5 // pred_check_branch
      %644 = sbr.rel (%p642) target = $region56
    $region55: #{conv_res_forward.1} parent=5 // pred_region
      %s645 = ssub.s32 %s10, 2
      // Predicated region
      $region57: #{conv_res_forward.1} parent=55 // pred_check
        %p646 = pneg %p142
      $region58: #{conv_res_forward.1} parent=55 // pred_check_branch
        %648 = sbr.rel (%p646) target = $region60
      $region59: #{conv_res_forward.1} parent=55 // pred_region
        %s649 = smul.u32 %s21, %s22
        %s650 = smul.u32 16, %s649
        %p651 = scmp.lt.s32.totalorder %s650, 15
        %s652 = scalar_select %p651, %s650, 15
        %s653 = smul.addr %s652, 8
        %s654 = scalar_lea.vmem %s4, %s653
      $region60: #{conv_res_forward.1} parent=55 // pred_fallthru
        _
    $region56: #{conv_res_forward.1} parent=5 // pred_fallthru
      _
  $region6: #{conv_res_forward.1} parent=0 // loop_footer
    %s14 = sadd.s32 1, %s10
  $region7: #{conv_res_forward.1} parent=0 // loop_footer_branch
    %9 = sbr.rel target = $region3
  $region8: #{conv_res_forward.1} parent=0 // loop_exit
    _

</llo_original>
